<compile_context>
chip_gen: v5e
topology: v5e:2x2
jax: 0.10.0
libtpu: 0.0.40
codegen_flags: <defaults>
</compile_context>

<pallas_src>
import math

import numpy as np
import jax
import jax.numpy as jnp
from jax import lax
from jax.experimental import pallas as pl
from jax.experimental.pallas import tpu as pltpu

BN_EPS = 1e-5


def _cdiv(a, b):
    return -(-a // b)


def _round_up(x, m):
    return _cdiv(x, m) * m


# ---------------------------------------------------------------------------
# Kernel 1: stride-1 path.  1x1 conv (BN scale folded into W) + BN bias.
# Layout: spatial on lanes, channels on sublanes -> lane-dense loads/stores.
# ---------------------------------------------------------------------------
def _conv_bn_kernel(x_ref, w_ref, b_ref, o_ref):
    # x_ref: (1, Cin, TS)   w_ref: (Cout, Cin)   b_ref: (Cout, 1) f32
    y = jnp.dot(w_ref[...], x_ref[0], preferred_element_type=jnp.float32)
    o_ref[0] = (y + b_ref[...]).astype(o_ref.dtype)


def _conv_bn(xs, w_fold, bias):
    """xs: (N, Cin, S) -> (N, Cout, S).  cdiv grid, no wrapper pad / slice.

    NOTE: the ragged last spatial block holds undefined lanes; they only feed
    the corresponding masked output lanes (no reduction over S), so no mask is
    needed here.
    """
    N, Cin, S = xs.shape
    Cout = w_fold.shape[0]
    if S <= 256:
        tile_s = S                                   # full-extent block (legal)
    else:
        tile_s = min(2048, (S // 128) * 128)         # lane-aligned, <= S
        if N == 1:
            # v7x: keep >= 2 spatial tiles so both TensorCores get work.
            tile_s = min(tile_s, max(128, ((S // 2) // 128) * 128))
    grid = (N, _cdiv(S, tile_s))

    return pl.pallas_call(
        _conv_bn_kernel,
        out_shape=jax.ShapeDtypeStruct((N, Cout, S), xs.dtype),
        grid=grid,
        in_specs=[
            pl.BlockSpec((1, Cin, tile_s), lambda n, t: (n, 0, t)),
            pl.BlockSpec((Cout, Cin), lambda n, t: (0, 0)),
            pl.BlockSpec((Cout, 1), lambda n, t: (0, 0)),
        ],
        out_specs=pl.BlockSpec((1, Cout, tile_s), lambda n, t: (n, 0, t)),
        compiler_params=pltpu.CompilerParams(
            dimension_semantics=("parallel", "parallel")),
    )(xs, w_fold, bias)


# ---------------------------------------------------------------------------
# Kernel 2: fused downsample (2x2 ceil avg-pool OR stride-s subsample)
#           + 1x1 conv + BN bias, in flat-spatial layout.
# ---------------------------------------------------------------------------
def _build_down_matrix(mode, s, W, Wo, rows_in, rows_out):
    """(rows_in*W, rows_out*Wo) matrix mapping a flat block of input image rows
    to a flat block of downsampled rows.
      avg    : weights 1/(2*cnt_w); the odd-H last-row count is fixed by corr.
      stride : 0/1 selection of every s-th row / column.
    All weights are powers of two (exact in bf16)."""
    m = np.zeros((rows_in * W, rows_out * Wo), np.float32)
    for i in range(rows_out):
        for wo in range(Wo):
            if mode == "avg":
                cols = [2 * wo] + ([2 * wo + 1] if 2 * wo + 1 < W else [])
                val = 0.5 / len(cols)
                for dh in (0, 1):
                    r = 2 * i + dh
                    if r < rows_in:
                        for wc in cols:
                            m[r * W + wc, i * Wo + wo] = val
            else:
                r, wc = s * i, s * wo
                if r < rows_in and wc < W:
                    m[r * W + wc, i * Wo + wo] = 1.0
    return m


def _down_conv_bn(x, w_fold, bias, mode, stride):
    """Fused {avg-pool | strided subsample} + 1x1 conv + folded BN.

    x (N, Cin, H, W) is viewed as (N, Cin, H*W); a resident (TIN, TOUT)
    gather/average matrix produces TH downsampled rows per grid step on the
    MXU, then the folded conv weight is applied.  No intermediate HBM traffic,
    lane-dense output stores.  Returns None if no legal tiling fits VMEM."""
    N, Cin, H, W = x.shape
    Cout = w_fold.shape[0]
    s = 2 if mode == "avg" else stride
    Ho, Wo = _cdiv(H, s), _cdiv(W, s)
    HW, OUT = H * W, Ho * Wo
    itemsize = jnp.dtype(x.dtype).itemsize

    # Row tiling: TH output rows per grid step.  Both the input block
    # (s*TH*W lanes) and the output block (TH*Wo lanes) must be 128-lane
    # aligned (legal BlockSpec + unmasked stores); otherwise use one
    # full-image block per sample (full-extent blocks are always legal).
    g1 = 128 // math.gcd(128, s * W)
    g2 = 128 // math.gcd(128, Wo)
    g = g1 * g2 // math.gcd(g1, g2)
    TH = _round_up(max(1, _cdiv(128, Wo)), g)        # lane-dense target
    if N == 1 and Ho >= 2 * g:
        TH = min(TH, (Ho // (2 * g)) * g)            # v7x: >=2 row tiles at N==1
    tin, tout = s * TH * W, TH * Wo
    if (TH < Ho and Cin * tin * itemsize <= (2 << 20)
            and tin * tout * itemsize <= (2 << 20)):
        rows_in, rows_out = s * TH, TH               # row-tiled path
    elif Cin * HW * itemsize <= (8 << 20):
        rows_in, rows_out = H, Ho                    # full image per step
        tin, tout = HW, OUT
    else:
        return None                                  # caller falls back

    need_mask = (HW % tin) != 0                      # ragged last input block
    has_corr = (mode == "avg") and (H % 2 == 1)      # ceil: last row count == 1
    n_tiles = _cdiv(Ho, rows_out)

    m = jnp.asarray(_build_down_matrix(mode, s, W, Wo, rows_in, rows_out),
                    dtype=x.dtype)
    xs = x.reshape(N, Cin, HW)

    operands = [xs, m, w_fold, bias]
    in_specs = [
        pl.BlockSpec((1, Cin, tin), lambda n, t: (n, 0, t)),
        pl.BlockSpec((tin, tout), lambda n, t: (0, 0)),
        pl.BlockSpec((Cout, Cin), lambda n, t: (0, 0)),
        pl.BlockSpec((Cout, 1), lambda n, t: (0, 0)),
    ]
    if has_corr:
        corr = np.ones((1, OUT), np.float32)
        corr[0, (Ho - 1) * Wo:] = 2.0                # last output row: cnt_h = 1
        operands.append(jnp.asarray(corr))
        in_specs.append(pl.BlockSpec((1, tout), lambda n, t: (0, t)))

    def kernel(x_ref, m_ref, w_ref, b_ref, *rest):
        if has_corr:
            c_ref, o_ref = rest
        else:
            (o_ref,) = rest
        xb = x_ref[0]                                       # (Cin, tin)
        if need_mask:
            # The gather matmul reduces over a possibly-partial flat-spatial
            # axis, so undefined tail lanes of the ragged last block must be
            # zeroed before the contraction.
            col = lax.broadcasted_iota(jnp.int32, xb.shape, 1)
            xb = jnp.where(col < HW - pl.program_id(1) * tin, xb, 0)
        pooled = jnp.dot(xb, m_ref[...],                    # (Cin, tout) f32
                         preferred_element_type=jnp.float32)
        if has_corr:
            pooled = pooled * c_ref[...]                    # ceil cnt_h fixup
        y = jnp.dot(w_ref[...], pooled.astype(xb.dtype),    # (Cout, tout) f32
                    preferred_element_type=jnp.float32)
        o_ref[0] = (y + b_ref[...]).astype(o_ref.dtype)

    out = pl.pallas_call(
        kernel,
        out_shape=jax.ShapeDtypeStruct((N, Cout, OUT), x.dtype),
        grid=(N, n_tiles),
        in_specs=in_specs,
        out_specs=pl.BlockSpec((1, Cout, tout), lambda n, t: (n, 0, t)),
        compiler_params=pltpu.CompilerParams(
            dimension_semantics=("parallel", "parallel")),
    )(*operands)
    return out.reshape(N, Cout, Ho, Wo)


# ---------------------------------------------------------------------------
# Pure-JAX helpers (reference + rare fallback)
# ---------------------------------------------------------------------------
def _avg_pool_2x2_ceil_jnp(x):
    N, C, H, W = x.shape
    Ho, Wo = _cdiv(H, 2), _cdiv(W, 2)
    xp = jnp.pad(x, ((0, 0), (0, 0), (0, 2 * Ho - H), (0, 2 * Wo - W)))
    ssum = xp.reshape(N, C, Ho, 2, Wo, 2).sum(axis=(3, 5))
    cnt_h = jnp.minimum(2, H - 2 * jnp.arange(Ho))
    cnt_w = jnp.minimum(2, W - 2 * jnp.arange(Wo))
    return ssum / (cnt_h[:, None] * cnt_w[None, :]).astype(x.dtype)


# ---------------------------------------------------------------------------
# Module forward
# ---------------------------------------------------------------------------
def shortcut_forward(x_nchw, conv_w, bn_gamma, bn_beta, bn_mean, bn_var,
                     stride=1, avg_downsample=False):
    N, Cin, H, W = x_nchw.shape
    Cout = conv_w.shape[0]

    # Fold eval-mode BatchNorm: scale into the conv weight, keep only the bias.
    # TODO(synk): eval-mode (running-stats) BN only; training-mode batch
    # statistics would need a cross-batch reduction pass.
    inv_std = 1.0 / jnp.sqrt(bn_var.astype(jnp.float32) + BN_EPS)
    scale = bn_gamma.astype(jnp.float32) * inv_std                    # (Cout,)
    w2d = conv_w.reshape(Cout, Cin).astype(jnp.float32)
    w_fold = (w2d * scale[:, None]).astype(x_nchw.dtype)              # (Cout, Cin)
    bias = (bn_beta.astype(jnp.float32)
            - bn_mean.astype(jnp.float32) * scale).reshape(Cout, 1)   # f32

    if avg_downsample and stride != 1:
        mode = "avg"
    elif stride != 1:
        mode = "stride"
    else:
        mode = None

    if mode is not None:
        y = _down_conv_bn(x_nchw, w_fold, bias, mode, stride)
        if y is not None:
            return y
        # TODO(synk): pathological shapes (no 128-lane-aligned row tile and
        # image too large for a full-image block) fall back to an XLA-level
        # downsample followed by the stride-1 conv kernel.
        xd = (_avg_pool_2x2_ceil_jnp(x_nchw) if mode == "avg"
              else x_nchw[:, :, ::stride, ::stride])
    else:
        xd = x_nchw

    Nd, _, Ho, Wo = xd.shape
    y = _conv_bn(xd.reshape(Nd, Cin, Ho * Wo), w_fold, bias)
    return y.reshape(Nd, Cout, Ho, Wo)


# ---------------------------------------------------------------------------
# Pure-JAX reference (PyTorch NCHW semantics)
# ---------------------------------------------------------------------------
def _reference(x, conv_w, gamma, beta, mean, var, stride, avg_downsample):
    if avg_downsample and stride != 1:
        x = _avg_pool_2x2_ceil_jnp(x)
    elif stride != 1:
        x = x[:, :, ::stride, ::stride]
    w2d = conv_w.reshape(conv_w.shape[0], conv_w.shape[1])
    y = jnp.einsum('nchw,oc->nohw', x, w2d)
    sc = gamma / jnp.sqrt(var + BN_EPS)
    return y * sc[None, :, None, None] + (beta - mean * sc)[None, :, None, None]


if __name__ == "__main__":
    key = jax.random.PRNGKey(0)

    def make_params(k, cin, cout):
        k_w, k_g, k_b, k_m, k_v = jax.random.split(k, 5)
        conv_w = jax.random.normal(k_w, (cout, cin, 1, 1), jnp.float32) * 0.2
        gamma = 1.0 + 0.1 * jax.random.normal(k_g, (cout,), jnp.float32)
        beta = 0.1 * jax.random.normal(k_b, (cout,), jnp.float32)
        mean = 0.1 * jax.random.normal(k_m, (cout,), jnp.float32)
        var = 0.5 + jnp.abs(jax.random.normal(k_v, (cout,), jnp.float32))
        return conv_w, gamma, beta, mean, var

    k_p1, k_p2, k_x1, k_x2, k_x3, k_x4 = jax.random.split(key, 6)
    p_small = make_params(k_p1, 4, 8)
    p_wide = make_params(k_p2, 8, 16)

    x_even = jax.random.normal(k_x1, (2, 4, 16, 16), jnp.float32)
    x_odd = jax.random.normal(k_x2, (2, 4, 15, 13), jnp.float32)
    x_t_avg = jax.random.normal(k_x3, (1, 8, 63, 64), jnp.float32)
    x_t_str = jax.random.normal(k_x4, (1, 8, 60, 64), jnp.float32)

    cases = [
        (x_even, p_small, 2, True),    # fused avg-pool + conv (full-image block)
        (x_even, p_small, 2, False),   # fused strided conv (full-image block)
        (x_even, p_small, 1, False),   # stride-1 conv
        (x_odd,  p_small, 2, True),    # ceil_mode avg pool with odd H and W
        (x_t_avg, p_wide, 2, True),    # row-tiled path, ragged block, odd H
        (x_t_str, p_wide, 2, False),   # row-tiled strided path, ragged block
    ]

    ok = True
    for xin, params, stride, avg_ds in cases:
        conv_w, gamma, beta, mean, var = params
        out = shortcut_forward(xin, conv_w, gamma, beta, mean, var,
                               stride=stride, avg_downsample=avg_ds)
        out = jax.block_until_ready(out)
        ref = _reference(xin, conv_w, gamma, beta, mean, var, stride, avg_ds)
        if not np.allclose(np.asarray(out), np.asarray(ref),
                           rtol=1e-4, atol=1e-4):
            ok = False
            print("MISMATCH shape=%s stride=%d avg=%s maxdiff=%.3e"
                  % (tuple(xin.shape), stride, avg_ds,
                     float(np.max(np.abs(np.asarray(out) - np.asarray(ref))))))

    if ok:
        print("KERNEL_OK")
</pallas_src>

<mosaic_0001>
module attributes {stable_mosaic.version = 11 : i64} {
  func.func @kernel(%arg0: i32, %arg1: i32, %arg2: memref<1x4x256xf32, #tpu.memory_space<vmem>>, %arg3: memref<256x64xf32, #tpu.memory_space<vmem>>, %arg4: memref<8x4xf32, #tpu.memory_space<vmem>>, %arg5: memref<8x1xf32, #tpu.memory_space<vmem>>, %arg6: memref<1x8x64xf32, #tpu.memory_space<vmem>>) attributes {dimension_semantics = [#tpu.dimension_semantics<parallel>, #tpu.dimension_semantics<parallel>], iteration_bounds = array<i64: 2, 1>, scalar_prefetch = 0 : i64, scratch_operands = 0 : i64, tpu.core_type = #tpu.core_type<tc>, window_params = [{transform_indices = @transform_0, window_bounds = array<i64: 1, 4, 256>}, {pipeline_mode = #tpu.pipeline_mode<synchronous>, transform_indices = @transform_1, window_bounds = array<i64: 256, 64>}, {pipeline_mode = #tpu.pipeline_mode<synchronous>, transform_indices = @transform_2, window_bounds = array<i64: 8, 4>}, {pipeline_mode = #tpu.pipeline_mode<synchronous>, transform_indices = @transform_3, window_bounds = array<i64: 8, 1>}, {transform_indices = @transform_4, window_bounds = array<i64: 1, 8, 64>}]} {
    %c0 = arith.constant 0 : index
    %c0_0 = arith.constant 0 : index
    %c0_1 = arith.constant 0 : index
    %0 = vector.load %arg2[%c0, %c0_0, %c0_1] : memref<1x4x256xf32, #tpu.memory_space<vmem>>, vector<1x4x256xf32>
    %1 = vector.shape_cast %0 : vector<1x4x256xf32> to vector<4x256xf32>
    %c0_2 = arith.constant 0 : index
    %c0_3 = arith.constant 0 : index
    %2 = vector.load %arg3[%c0_2, %c0_3] : memref<256x64xf32, #tpu.memory_space<vmem>>, vector<256x64xf32>
    %cst = arith.constant dense<0.000000e+00> : vector<4x64xf32>
    %3 = tpu.matmul %1, %2, %cst {dimension_numbers = #tpu.dot_dimension_numbers<[1], [0], [0], [1], [0, 0, 1, 1], [], []>} : vector<4x256xf32>, vector<256x64xf32>, vector<4x64xf32> -> vector<4x64xf32>
    %c0_4 = arith.constant 0 : index
    %c0_5 = arith.constant 0 : index
    %4 = vector.load %arg4[%c0_4, %c0_5] : memref<8x4xf32, #tpu.memory_space<vmem>>, vector<8x4xf32>
    %cst_6 = arith.constant dense<0.000000e+00> : vector<8x64xf32>
    %5 = tpu.matmul %4, %3, %cst_6 {dimension_numbers = #tpu.dot_dimension_numbers<[1], [0], [0], [1], [0, 0, 1, 1], [], []>} : vector<8x4xf32>, vector<4x64xf32>, vector<8x64xf32> -> vector<8x64xf32>
    %c0_7 = arith.constant 0 : index
    %c0_8 = arith.constant 0 : index
    %6 = vector.load %arg5[%c0_7, %c0_8] : memref<8x1xf32, #tpu.memory_space<vmem>>, vector<8x1xf32>
    %7 = vector.broadcast %6 : vector<8x1xf32> to vector<8x64xf32>
    %8 = arith.addf %5, %7 : vector<8x64xf32>
    %c0_9 = arith.constant 0 : index
    %c0_10 = arith.constant 0 : index
    %c0_11 = arith.constant 0 : index
    %9 = vector.load %arg6[%c0_9, %c0_10, %c0_11] : memref<1x8x64xf32, #tpu.memory_space<vmem>>, vector<1x8x64xf32>
    %10 = vector.shape_cast %9 : vector<1x8x64xf32> to vector<8x64xf32>
    %11 = vector.shape_cast %8 : vector<8x64xf32> to vector<1x8x64xf32>
    tpu.vector_store %arg6[%c0_9, %c0_10, %c0_11], %11 {strides = array<i32>} : memref<1x8x64xf32, #tpu.memory_space<vmem>>, vector<1x8x64xf32>,
    return
  }
  func.func @transform_0(%arg0: i32, %arg1: i32) -> (i32, i32, i32) {
    %c0_i32 = arith.constant 0 : i32
    %c0_i32_0 = arith.constant 0 : i32
    return %arg0, %c0_i32, %arg1 : i32, i32, i32
  }
  func.func @transform_1(%arg0: i32, %arg1: i32) -> (i32, i32) {
    %c0_i32 = arith.constant 0 : i32
    %c0_i32_0 = arith.constant 0 : i32
    %c0_i32_1 = arith.constant 0 : i32
    return %c0_i32, %c0_i32_0 : i32, i32
  }
  func.func @transform_2(%arg0: i32, %arg1: i32) -> (i32, i32) {
    %c0_i32 = arith.constant 0 : i32
    %c0_i32_0 = arith.constant 0 : i32
    %c0_i32_1 = arith.constant 0 : i32
    return %c0_i32, %c0_i32_0 : i32, i32
  }
  func.func @transform_3(%arg0: i32, %arg1: i32) -> (i32, i32) {
    %c0_i32 = arith.constant 0 : i32
    %c0_i32_0 = arith.constant 0 : i32
    %c0_i32_1 = arith.constant 0 : i32
    return %c0_i32, %c0_i32_0 : i32, i32
  }
  func.func @transform_4(%arg0: i32, %arg1: i32) -> (i32, i32, i32) {
    %c0_i32 = arith.constant 0 : i32
    %c0_i32_0 = arith.constant 0 : i32
    return %arg0, %c0_i32, %arg1 : i32, i32, i32
  }
}

</mosaic_0001>

<llo_original>
// kernel: tpu_custom_call.1
$region0: #{tpu_custom_call.1}
  #allocation0 [shape = 'u32[]', space=smem, size = 0x4, offset = 0x4, fixed_abs, tag = 'smem constant byte address 0x4 - core index']
  #allocation1 [shape = 'u32[72,128]{1,0:T(1,128)}', space=vmem, size = 0x9000, scoped, tag = 'internal scratch']
  %s0 = inlined_call_operand.vmem [shape: f32[2,4,256], index: 0, kind: input, shape index: {}]
  %s1 = inlined_call_operand.vmem [shape: f32[256,64], index: 1, kind: input, shape index: {}]
  %s2 = inlined_call_operand.vmem [shape: f32[8,4], index: 2, kind: input, shape index: {}]
  %s3 = inlined_call_operand.vmem [shape: f32[8,1], index: 3, kind: input, shape index: {}]
  %s4 = inlined_call_operand.hbm [shape: f32[2,8,64], index: 4, kind: output, shape index: {}]
  %s5 = sld [smem:[#allocation0]]
  $region49: #{tpu_custom_call.1} parent=0
    _
  %s7 = ssub.s32 1, %s5
  %s8 = scalar_select 0, %s7, %s5
  $region1: #{tpu_custom_call.1} parent=0
    #allocation2 [shape = 'u8[8192]{0}', space=vmem, size = 0x2000, scoped, tag = 'output window, operand 0']
    #allocation3 [shape = 's32[2]{0}', space=sflag, size = 0x8, scoped, tag = 'scoped memory for tpu_custom_call.1']
    %9 = vsyncpa [#allocation3], 0
    %s10 = scalar_lea.sflag [#allocation3], 1
    %11 = vsyncpa %s10, 0
    loop: start=0, step=1, limit=4
    $region2: #{tpu_custom_call.1} parent=1 // loop_pre_header
      _
    $region3: #{tpu_custom_call.1} parent=1 // loop_header
      %s13 = sphi 0, %s17
      %p14 = scmp.ge.s32.totalorder %s13, 4
      %s20 = sphi 0, %s32
      %s21 = sphi 0, %s28
      %s22 = sphi 0, %s20
      %s23 = sphi 0, %s21
      %s24 = sphi 0, %s22
      %s25 = sphi 0, %s23
      %s37 = sphi 0, %s39
      %s40 = sphi 0, %s37
      %s41 = sphi 0, %s40
      %s57 = sphi 0, %s41
      %s61 = sphi 0, %s61
      %s63 = sphi 0, %s61
      %s64 = sphi 0, %s63
      %s78 = sphi 0, %s64
      %s82 = sphi 0, %s82
      %s84 = sphi 0, %s82
      %s85 = sphi 0, %s84
      %s99 = sphi 0, %s85
      %s103 = sphi 0, %s103
      %s105 = sphi 0, %s103
      %s106 = sphi 0, %s105
      %s120 = sphi 0, %s106
      %s128 = sphi 0, %s130
      %s131 = sphi 0, %s128
      %s132 = sphi 0, %s131
      %s148 = sphi 0, %s132
    $region4: #{tpu_custom_call.1} parent=1 // loop_header_branch
      %16 = sbr.rel (%p14) target = $region8
    $region5: #{tpu_custom_call.1} parent=1 // loop_body
      %s18 = ssub.s32 %s13, 1
      %s19 = ssub.s32 %s13, 2
      %s26 = sadd.s32 1, %s21
      %p27 = scmp.ge.s32.totalorder %s26, 1
      %s28 = scalar_select %p27, 0, %s26
      %s29 = sadd.s32 1, %s20
      %s30 = scalar_select %p27, %s29, %s20
      %p31 = scmp.ge.s32.totalorder %s30, 2
      %s32 = scalar_select %p31, 0, %s30
      %s33 = ssub.s32 %s20, %s32
      %s34 = ssub.s32 %s21, %s28
      %s35 = sor.u32 %s33, %s34
      %p36 = scmp.eq.s32.totalorder %s35, 0
      %s38 = sadd.s32 %s37, 1
      %s39 = scalar_select %p36, %s37, %s38
      %p42 = pneg %p36
      %p43 = scmp.eq.s32.totalorder %s13, 1
      %p44 = por %p42, %p43
      %p45 = scmp.ne.s32.totalorder %s37, %s40
      %p46 = scmp.eq.s32.totalorder %s13, 0
      %p47 = por %p45, %p46
      %p48 = scmp.ne.s32.totalorder %s37, %s40
      %p49 = scmp.eq.s32.totalorder %s18, 1
      %p50 = por %p48, %p49
      %p51 = scmp.ne.s32.totalorder %s40, %s41
      %p52 = scmp.eq.s32.totalorder %s18, 0
      %p53 = por %p51, %p52
      %p54 = scmp.ne.s32.totalorder %s40, %s41
      %p55 = scmp.eq.s32.totalorder %s19, 1
      %p56 = por %p54, %p55
      %p58 = scmp.ne.s32.totalorder %s41, %s57
      %p59 = scmp.eq.s32.totalorder %s19, 0
      %p60 = por %p58, %p59
      %s62 = sadd.s32 %s61, 1
      %p65 = scmp.eq.s32.totalorder %s13, 1
      %p66 = scmp.ne.s32.totalorder %s61, %s63
      %p67 = scmp.eq.s32.totalorder %s13, 0
      %p68 = por %p66, %p67
      %p69 = scmp.ne.s32.totalorder %s61, %s63
      %p70 = scmp.eq.s32.totalorder %s18, 1
      %p71 = por %p69, %p70
      %p72 = scmp.ne.s32.totalorder %s63, %s64
      %p73 = scmp.eq.s32.totalorder %s18, 0
      %p74 = por %p72, %p73
      %p75 = scmp.ne.s32.totalorder %s63, %s64
      %p76 = scmp.eq.s32.totalorder %s19, 1
      %p77 = por %p75, %p76
      %p79 = scmp.ne.s32.totalorder %s64, %s78
      %p80 = scmp.eq.s32.totalorder %s19, 0
      %p81 = por %p79, %p80
      %s83 = sadd.s32 %s82, 1
      %p86 = scmp.eq.s32.totalorder %s13, 1
      %p87 = scmp.ne.s32.totalorder %s82, %s84
      %p88 = scmp.eq.s32.totalorder %s13, 0
      %p89 = por %p87, %p88
      %p90 = scmp.ne.s32.totalorder %s82, %s84
      %p91 = scmp.eq.s32.totalorder %s18, 1
      %p92 = por %p90, %p91
      %p93 = scmp.ne.s32.totalorder %s84, %s85
      %p94 = scmp.eq.s32.totalorder %s18, 0
      %p95 = por %p93, %p94
      %p96 = scmp.ne.s32.totalorder %s84, %s85
      %p97 = scmp.eq.s32.totalorder %s19, 1
      %p98 = por %p96, %p97
      %p100 = scmp.ne.s32.totalorder %s85, %s99
      %p101 = scmp.eq.s32.totalorder %s19, 0
      %p102 = por %p100, %p101
      %s104 = sadd.s32 %s103, 1
      %p107 = scmp.eq.s32.totalorder %s13, 1
      %p108 = scmp.ne.s32.totalorder %s103, %s105
      %p109 = scmp.eq.s32.totalorder %s13, 0
      %p110 = por %p108, %p109
      %p111 = scmp.ne.s32.totalorder %s103, %s105
      %p112 = scmp.eq.s32.totalorder %s18, 1
      %p113 = por %p111, %p112
      %p114 = scmp.ne.s32.totalorder %s105, %s106
      %p115 = scmp.eq.s32.totalorder %s18, 0
      %p116 = por %p114, %p115
      %p117 = scmp.ne.s32.totalorder %s105, %s106
      %p118 = scmp.eq.s32.totalorder %s19, 1
      %p119 = por %p117, %p118
      %p121 = scmp.ne.s32.totalorder %s106, %s120
      %p122 = scmp.eq.s32.totalorder %s19, 0
      %p123 = por %p121, %p122
      %s124 = ssub.s32 %s20, %s32
      %s125 = ssub.s32 %s21, %s28
      %s126 = sor.u32 %s124, %s125
      %p127 = scmp.eq.s32.totalorder %s126, 0
      %s129 = sadd.s32 %s128, 1
      %s130 = scalar_select %p127, %s128, %s129
      %p133 = pneg %p127
      %p134 = scmp.eq.s32.totalorder %s13, 1
      %p135 = por %p133, %p134
      %p136 = scmp.ne.s32.totalorder %s128, %s131
      %p137 = scmp.eq.s32.totalorder %s13, 0
      %p138 = por %p136, %p137
      %p139 = scmp.ne.s32.totalorder %s128, %s131
      %p140 = scmp.eq.s32.totalorder %s18, 1
      %p141 = por %p139, %p140
      %p142 = scmp.ne.s32.totalorder %s131, %s132
      %p143 = scmp.eq.s32.totalorder %s18, 0
      %p144 = por %p142, %p143
      %p145 = scmp.ne.s32.totalorder %s131, %s132
      %p146 = scmp.eq.s32.totalorder %s19, 1
      %p147 = por %p145, %p146
      %p149 = scmp.ne.s32.totalorder %s132, %s148
      %p150 = scmp.eq.s32.totalorder %s19, 0
      %p151 = por %p149, %p150
      %p152 = scmp.le.s32.totalorder 1, %s13
      %p153 = scmp.lt.s32.totalorder %s13, 3
      %p154 = pnand %p152, %p153
      %p155 = pneg %p154
      // Predicated region
      $region9: #{tpu_custom_call.1} parent=5 // pred_check
        _
      $region10: #{tpu_custom_call.1} parent=5 // pred_check_branch
        %157 = sbr.rel (%p154) target = $region12
      $region11: #{tpu_custom_call.1} parent=5 // pred_region
        %s158 = ssub.s32 %s13, 1
        // Predicated region
        $region13: #{tpu_custom_call.1} parent=11 // pred_check
          %p159 = pneg %p74
        $region14: #{tpu_custom_call.1} parent=11 // pred_check_branch
          %161 = sbr.rel (%p159) target = $region16
        $region15: #{tpu_custom_call.1} parent=11 // pred_region
          _
        $region16: #{tpu_custom_call.1} parent=11 // pred_fallthru
          _
        // Predicated region
        $region17: #{tpu_custom_call.1} parent=11 // pred_check
          %p162 = pneg %p95
        $region18: #{tpu_custom_call.1} parent=11 // pred_check_branch
          %164 = sbr.rel (%p162) target = $region20
        $region19: #{tpu_custom_call.1} parent=11 // pred_region
          _
        $region20: #{tpu_custom_call.1} parent=11 // pred_fallthru
          _
        // Predicated region
        $region21: #{tpu_custom_call.1} parent=11 // pred_check
          %p165 = pneg %p116
        $region22: #{tpu_custom_call.1} parent=11 // pred_check_branch
          %167 = sbr.rel (%p165) target = $region24
        $region23: #{tpu_custom_call.1} parent=11 // pred_region
          _
        $region24: #{tpu_custom_call.1} parent=11 // pred_fallthru
          _
      $region12: #{tpu_custom_call.1} parent=5 // pred_fallthru
        _
      %p168 = scmp.lt.s32.totalorder %s13, 2
      // Predicated region
      $region25: #{tpu_custom_call.1} parent=5 // pred_check
        %p169 = pneg %p168
      $region26: #{tpu_custom_call.1} parent=5 // pred_check_branch
        %171 = sbr.rel (%p169) target = $region28
      $region27: #{tpu_custom_call.1} parent=5 // pred_region
        // Predicated region
        $region29: #{tpu_custom_call.1} parent=27 // pred_check
          %p172 = pneg %p47
        $region30: #{tpu_custom_call.1} parent=27 // pred_check_branch
          %174 = sbr.rel (%p172) target = $region32
        $region31: #{tpu_custom_call.1} parent=27 // pred_region
          %s175 = smul.u32 2, %s21
          %p176 = scmp.lt.s32.totalorder %s20, 1
          %s177 = scalar_select %p176, %s20, 1
          %p178 = scmp.lt.s32.totalorder %s175, 1
          %s179 = scalar_select %p178, %s175, 1
          %s180 = smul.addr %s177, 2
          %s181 = sadd.s32 %s179, %s180
          %s182 = smul.addr %s181, 4
          %s183 = scalar_lea.vmem %s0, %s182
          %s184 = smul.u32 2, %s21
        $region32: #{tpu_custom_call.1} parent=27 // pred_fallthru
          _
      $region28: #{tpu_custom_call.1} parent=5 // pred_fallthru
        _
      %p185 = scmp.le.s32.totalorder 1, %s13
      %p186 = scmp.lt.s32.totalorder %s13, 3
      %p187 = pnand %p185, %p186
      %p188 = pneg %p187
      // Predicated region
      $region33: #{tpu_custom_call.1} parent=5 // pred_check
        _
      $region34: #{tpu_custom_call.1} parent=5 // pred_check_branch
        %190 = sbr.rel (%p187) target = $region36
      $region35: #{tpu_custom_call.1} parent=5 // pred_region
        %s191 = ssub.s32 %s13, 1
        %s192 = smul.u32 2, %s23
        %p193 = scmp.lt.s32.totalorder %s22, 1
        %s194 = scalar_select %p193, %s22, 1
        %p195 = scmp.lt.s32.totalorder %s192, 1
        %s196 = scalar_select %p195, %s192, 1
        %s197 = smul.addr %s194, 2
        %s198 = sadd.s32 %s196, %s197
        %s199 = smul.addr %s198, 4
        %s200 = scalar_lea.vmem %s0, %s199
        %p201 = pneg %p53
        %p202 = pneg %p50
        %p203 = pneg %p74
        %p204 = pneg %p71
        %p205 = pneg %p95
        %p206 = pneg %p92
        %p207 = pneg %p116
        %p208 = pneg %p113
        %p209 = pneg %p144
        %p210 = pneg %p141
        %s211 = sand.u32 %s131, 1
        %s212 = scalar_lea.sflag [#allocation3], %s211
        %s213 = sand.u32 %s131, 1
        %s214 = smul.addr %s213, 8
        %s215 = scalar_lea.vmem [#allocation2], %s214
        %s216 = smul.u32 2, %s23
        %p217 = scmp.lt.s32.totalorder %s22, 1
        %s218 = scalar_select %p217, %s22, 1
        %p219 = scmp.lt.s32.totalorder %s216, 1
        %s220 = scalar_select %p219, %s216, 1
        %s221 = smul.addr %s218, 2
        %s222 = sadd.s32 %s220, %s221
        %s223 = smul.addr %s222, 4
        %s224 = scalar_lea.vmem %s0, %s223
        %s225 = smul.u32 2, %s23
        %v226 = vld [vmem:[%s224] sm:$0xff]
        %v227 = vld [vmem:[%s1] sm:$0xff]
        %v228 = vld [vmem:[%s1 + $0x8] sm:$0xff]
        %v229 = vld [vmem:[%s1 + $0x10] sm:$0xff]
        %v230 = vld [vmem:[%s1 + $0x18] sm:$0xff]
        %v231 = vld [vmem:[%s1 + $0x20] sm:$0xff]
        %v232 = vld [vmem:[%s1 + $0x28] sm:$0xff]
        %v233 = vld [vmem:[%s1 + $0x30] sm:$0xff]
        %v234 = vld [vmem:[%s1 + $0x38] sm:$0xff]
        %v235 = vld [vmem:[%s1 + $0x40] sm:$0xff]
        %v236 = vld [vmem:[%s1 + $0x48] sm:$0xff]
        %v237 = vld [vmem:[%s1 + $0x50] sm:$0xff]
        %v238 = vld [vmem:[%s1 + $0x58] sm:$0xff]
        %v239 = vld [vmem:[%s1 + $0x60] sm:$0xff]
        %v240 = vld [vmem:[%s1 + $0x68] sm:$0xff]
        %v241 = vld [vmem:[%s1 + $0x70] sm:$0xff]
        %v242 = vld [vmem:[%s1 + $0x78] sm:$0xff]
        %v243 = vld [vmem:[%s1 + $0x80] sm:$0xff]
        %v244 = vld [vmem:[%s1 + $0x88] sm:$0xff]
        %v245 = vld [vmem:[%s1 + $0x90] sm:$0xff]
        %v246 = vld [vmem:[%s1 + $0x98] sm:$0xff]
        %v247 = vld [vmem:[%s1 + $0xa0] sm:$0xff]
        %v248 = vld [vmem:[%s1 + $0xa8] sm:$0xff]
        %v249 = vld [vmem:[%s1 + $0xb0] sm:$0xff]
        %v250 = vld [vmem:[%s1 + $0xb8] sm:$0xff]
        %v251 = vld [vmem:[%s1 + $0xc0] sm:$0xff]
        %v252 = vld [vmem:[%s1 + $0xc8] sm:$0xff]
        %v253 = vld [vmem:[%s1 + $0xd0] sm:$0xff]
        %v254 = vld [vmem:[%s1 + $0xd8] sm:$0xff]
        %v255 = vld [vmem:[%s1 + $0xe0] sm:$0xff]
        %v256 = vld [vmem:[%s1 + $0xe8] sm:$0xff]
        %v257 = vld [vmem:[%s1 + $0xf0] sm:$0xff]
        %v258 = vld [vmem:[%s1 + $0xf8] sm:$0xff]
        %260 = vst [vmem:[#allocation1] ss:$2 sm:$0xff] %v226
        %v261 = vld.sshfl [vmem:[#allocation1] sm:$0xff pattern:$0x75316420]
        %v262 = vld.sshfl [vmem:[#allocation1 + $0x8] sm:$0xff pattern:$0x75316420]
        %265 = vmatpush.msra.mxu0 %v242
        %266 = vmatpush.msra.mxu0 %v241
        %267 = vmatpush.msra.mxu0 %v240
        %268 = vmatpush.msra.mxu0 %v239
        %269 = vmatpush.msra.mxu0 %v238
        %270 = vmatpush.msra.mxu0 %v237
        %271 = vmatpush.msra.mxu0 %v236
        %272 = vmatpush.msra.mxu0 %v235
        %273 = vmatpush.msra.mxu0 %v234
        %274 = vmatpush.msra.mxu0 %v233
        %275 = vmatpush.msra.mxu0 %v232
        %276 = vmatpush.msra.mxu0 %v231
        %277 = vmatpush.msra.mxu0 %v230
        %278 = vmatpush.msra.mxu0 %v229
        %279 = vmatpush.msra.mxu0 %v228
        %280 = vmatpush.msra.mxu0 %v227
        %281 = vmatmul.f32.gmra.mxu0 %v261
        %v282 = vpop.f32.mrf.mxu0
        %v283 = vadd.f32 0.0, %v282
        %284 = vdwg.mxu0
        %285 = vmatpush.msra.mxu0 %v258
        %286 = vmatpush.msra.mxu0 %v257
        %287 = vmatpush.msra.mxu0 %v256
        %288 = vmatpush.msra.mxu0 %v255
        %289 = vmatpush.msra.mxu0 %v254
        %290 = vmatpush.msra.mxu0 %v253
        %291 = vmatpush.msra.mxu0 %v252
        %292 = vmatpush.msra.mxu0 %v251
        %293 = vmatpush.msra.mxu0 %v250
        %294 = vmatpush.msra.mxu0 %v249
        %295 = vmatpush.msra.mxu0 %v248
        %296 = vmatpush.msra.mxu0 %v247
        %297 = vmatpush.msra.mxu0 %v246
        %298 = vmatpush.msra.mxu0 %v245
        %299 = vmatpush.msra.mxu0 %v244
        %300 = vmatpush.msra.mxu0 %v243
        %301 = vmatmul.f32.gmra.mxu0 %v262
        %v302 = vpop.f32.mrf.mxu0
        %v303 = vadd.f32 %v283, %v302
        %304 = vdwg.mxu0
        %v305 = vld [vmem:[%s2] sm:$0xff]
        %v306 = vld [vmem:[%s3] sm:$0xff]
        %308 = vset.pattern.permute.xlu0 0
        %309 = vperm.xlu0 %308, %v306
        %v310 = vpop.permute.xlu0 %309
        %vm312 = vcmask 31744
        %v314 = vsel %vm312, %v305, 0
        %vm316 = vcmask 1043456
        %v318 = vsel %vm316, %v303, 0
        %320 = vmatpush.msra.mxu0 0.0
        %321 = vmatpush.msra.mxu0 0.0
        %322 = vmatpush.msra.mxu0 0.0
        %323 = vmatpush.msra.mxu0 0.0
        %324 = vmatpush.msra.mxu0 0.0
        %325 = vmatpush.msra.mxu0 0.0
        %326 = vmatpush.msra.mxu0 0.0
        %327 = vmatpush.msra.mxu0 0.0
        %328 = vmatpush.msra.mxu0 0.0
        %329 = vmatpush.msra.mxu0 0.0
        %330 = vmatpush.msra.mxu0 0.0
        %331 = vmatpush.msra.mxu0 0.0
        %332 = vmatpush.msra.mxu0 0.0
        %333 = vmatpush.msra.mxu0 0.0
        %334 = vmatpush.msra.mxu0 0.0
        %335 = vmatpush.msra.mxu0 %v318
        %336 = vmatmul.f32.gmra.mxu0 %v314
        %v337 = vpop.f32.mrf.mxu0
        %v338 = vadd.f32 %v310, %v337
        %339 = vdwg.mxu0
        %vm340 = vcmask 523264
        %341 = vst.msk [vmem:[%s215] sm:$0xff] %vm340, %v338
        %s342 = sand.u32 %s131, 1
        %s343 = scalar_lea.sflag [#allocation3], %s342
        %s344 = sand.u32 %s131, 1
        %s345 = smul.addr %s344, 8
        %s346 = scalar_lea.vmem [#allocation2], %s345
        // Predicated region
        $region37: #{tpu_custom_call.1} parent=35 // pred_check
          %p347 = pneg %p141
        $region38: #{tpu_custom_call.1} parent=35 // pred_check_branch
          %349 = sbr.rel (%p347) target = $region40
        $region39: #{tpu_custom_call.1} parent=35 // pred_region
          %351 = vsyncadd %s343, 0
          %s352 = sadd.s32 %s23, %s22
          %s353 = smul.addr %s352, 8
          %s354 = scalar_lea.hbm %s4, %s353
          %s356 = sshll.u32 %s346, 4
          %s357 = int_to_ptr.vmem [resolvable:$true] %s356
          %s358 = sshll.u32 %s354, 4
          %s359 = int_to_ptr.hbm [resolvable:$true] %s358
          %361 = dma.vmem_to_hbm [thread:$0]  %s357, 128, %s359, %s343
        $region40: #{tpu_custom_call.1} parent=35 // pred_fallthru
          _
      $region36: #{tpu_custom_call.1} parent=5 // pred_fallthru
        _
      %p362 = scmp.le.s32.totalorder 2, %s13
      // Predicated region
      $region41: #{tpu_custom_call.1} parent=5 // pred_check
        %p363 = pneg %p362
      $region42: #{tpu_custom_call.1} parent=5 // pred_check_branch
        %365 = sbr.rel (%p363) target = $region44
      $region43: #{tpu_custom_call.1} parent=5 // pred_region
        %s366 = ssub.s32 %s13, 2
        // Predicated region
        $region45: #{tpu_custom_call.1} parent=43 // pred_check
          %p367 = pneg %p147
        $region46: #{tpu_custom_call.1} parent=43 // pred_check_branch
          %369 = sbr.rel (%p367) target = $region48
        $region47: #{tpu_custom_call.1} parent=43 // pred_region
          %s370 = sand.u32 %s132, 1
          %s371 = scalar_lea.sflag [#allocation3], %s370
          %s372 = sand.u32 %s132, 1
          %s373 = smul.addr %s372, 8
          %s374 = scalar_lea.vmem [#allocation2], %s373
          %376 = dma.done %s371, 128
        $region48: #{tpu_custom_call.1} parent=43 // pred_fallthru
          _
      $region44: #{tpu_custom_call.1} parent=5 // pred_fallthru
        _
    $region6: #{tpu_custom_call.1} parent=1 // loop_footer
      %s17 = sadd.s32 1, %s13
    $region7: #{tpu_custom_call.1} parent=1 // loop_footer_branch
      %12 = sbr.rel target = $region3
    $region8: #{tpu_custom_call.1} parent=1 // loop_exit
      _
    %377 = vsyncpa [#allocation3], 1
    %s378 = scalar_lea.sflag [#allocation3], 1
    %379 = vsyncpa %s378, 1

</llo_original>
